<compile_context>
chip_gen: v7x
topology: tpu7x:2x2x1
jax: 0.10.0
libtpu: 0.0.40
codegen_flags: <defaults>
</compile_context>

<pallas_src>
from functools import partial

import numpy as np
import jax
import jax.numpy as jnp
from jax.experimental import pallas as pl
from jax.experimental.pallas import tpu as pltpu

_INV_SQRT2 = 0.7071067811865476


# ------------------------- Pallas kernel -------------------------

def mlp_kernel(x_ref, w1t_ref, b1_ref, pool_ref, o_ref, *acc_refs, hidden_chunk):
    # x_ref:    (TM, IN)        input row tile, original dtype (cast to bf16 here)
    # w1t_ref:  (IN, HID)       bf16 fc1 weight, transposed      (grid-invariant)
    # b1_ref:   (1, HID)        f32 fc1 bias                     (grid-invariant)
    # pool_ref: (HID, OUT_PAD)  f32 adaptive-avg-pool matrix     (grid-invariant)
    # o_ref:    (TM, OUT_PAD)   bf16 output tile (lane-dense: OUT_PAD % 128 == 0)
    # acc_refs: optional ((TM, OUT_PAD) f32,) scratch accumulator when chunking
    hidden = w1t_ref.shape[1]
    n_chunks = hidden // hidden_chunk

    x_bf = x_ref[...].astype(jnp.bfloat16)          # cast in-VMEM (no wrapper pass)

    for c in range(n_chunks):                       # static, fully unrolled
        lo, hi = c * hidden_chunk, (c + 1) * hidden_chunk
        h = jnp.dot(x_bf, w1t_ref[:, lo:hi], preferred_element_type=jnp.float32)
        h = h + b1_ref[:, lo:hi]
        # exact GELU (matches nn.GELU default): 0.5*x*(1+erf(x/sqrt(2))), f32 epilogue
        h = 0.5 * h * (1.0 + jax.lax.erf(h * _INV_SQRT2))
        # Dropout(p=0.0) == identity.  Pooling matmul kept in f32 for exact 1/k weights.
        part = jnp.dot(h, pool_ref[lo:hi, :], preferred_element_type=jnp.float32)
        if n_chunks == 1:
            o_ref[...] = part.astype(o_ref.dtype)
        else:
            acc_ref = acc_refs[0]
            if c == 0:
                acc_ref[...] = part
            else:
                acc_ref[...] += part

    if n_chunks > 1:
        o_ref[...] = acc_refs[0][...].astype(o_ref.dtype)


# ------------------------- host-side helpers -------------------------

def _round_up(a: int, b: int) -> int:
    return ((a + b - 1) // b) * b


def _pick_hidden_chunk(hidden: int) -> int:
    # 256-512 wide slabs bound the f32 GELU intermediate; fall back to the full
    # hidden width when it isn't 128-divisible (e.g. the toy hidden=64).
    for c in (512, 256, 128):
        if hidden % c == 0:
            return c
    return hidden


def _device_vmem_bytes() -> int:
    try:
        return int(pltpu.get_tpu_info().vmem_capacity_bytes)
    except Exception:
        return 64 * 1024 * 1024  # conservative default (v7x per-TC VMEM)


def adaptive_avg_pool1d_matrix(l_in: int, l_out: int, l_out_pad: int) -> np.ndarray:
    """Exact P s.t. (x @ P)[:, :l_out] == AdaptiveAvgPool1d(l_out)(x) on the last dim.

    Columns [l_out:l_out_pad) are zero padding (lane-dense stores)."""
    P = np.zeros((l_in, l_out_pad), dtype=np.float32)
    for i in range(l_out):
        s = (i * l_in) // l_out
        e = -((-(i + 1) * l_in) // l_out)  # ceil((i+1)*l_in / l_out)
        P[s:e, i] = 1.0 / (e - s)
    return P


@partial(jax.jit, static_argnames=("out_features", "tm"))
def mlp_forward(x, w1, b1, *, out_features, tm=512):
    """x: [B, N, in_features]; w1: [hidden, in_features]; b1: [hidden]."""
    B, N, in_features = x.shape
    hidden = w1.shape[0]
    M = B * N

    # --- row tile: single grid step for small/medium M (no forced split);
    #     MXU-friendly 256-granular tiles for large M (v7x shards "parallel"). ---
    if M <= tm:
        tm_eff = _round_up(max(M, 1), 16)
    else:
        tm_eff = (tm // 256) * 256 if tm >= 256 else _round_up(tm, 16)
    M_pad = _round_up(M, tm_eff)
    grid = M_pad // tm_eff

    # Lane-dense output: pad the feature axis to a multiple of 128.
    out_pad = _round_up(max(out_features, 1), 128)

    hidden_chunk = _pick_hidden_chunk(hidden)
    n_chunks = hidden // hidden_chunk

    # --- operand prep (weights only; x keeps its dtype, cast happens in-kernel) ---
    x2 = x.reshape(M, in_features)
    if M_pad != M:
        x2 = jnp.pad(x2, ((0, M_pad - M), (0, 0)))
    w1t = jnp.transpose(w1).astype(jnp.bfloat16)             # (in, hidden)
    b1r = b1.reshape(1, hidden).astype(jnp.float32)
    pool = jnp.asarray(
        adaptive_avg_pool1d_matrix(hidden, out_features, out_pad))  # f32 (hidden, out_pad)

    # --- VMEM budget derived from the real footprint, capped per device ---
    bytes_need = (
        2 * tm_eff * in_features * x.dtype.itemsize   # x tiles (double-buffered)
        + 2 * in_features * hidden * 2                # w1t bf16
        + 2 * hidden * 4                              # b1 f32
        + 2 * hidden * out_pad * 4                    # pool f32
        + 2 * tm_eff * out_pad * 2                    # out tiles bf16
        + tm_eff * out_pad * 4                        # acc scratch f32
        + 2 * tm_eff * hidden_chunk * 4               # f32 GELU intermediate
    )
    vmem_limit = min(max(int(bytes_need * 1.5) + (4 << 20), 16 << 20),
                     int(_device_vmem_bytes() * 0.75))

    scratch_shapes = ([pltpu.VMEM((tm_eff, out_pad), jnp.float32)]
                      if n_chunks > 1 else [])

    out = pl.pallas_call(
        partial(mlp_kernel, hidden_chunk=hidden_chunk),
        out_shape=jax.ShapeDtypeStruct((M_pad, out_pad), jnp.bfloat16),
        grid_spec=pltpu.PrefetchScalarGridSpec(
            num_scalar_prefetch=0,
            grid=(grid,),
            in_specs=[
                pl.BlockSpec((tm_eff, in_features), lambda i: (i, 0)),
                pl.BlockSpec((in_features, hidden), lambda i: (0, 0)),
                pl.BlockSpec((1, hidden), lambda i: (0, 0)),
                pl.BlockSpec((hidden, out_pad), lambda i: (0, 0)),
            ],
            out_specs=pl.BlockSpec((tm_eff, out_pad), lambda i: (i, 0)),
            scratch_shapes=scratch_shapes,
        ),
        compiler_params=pltpu.CompilerParams(
            dimension_semantics=("parallel",),
            vmem_limit_bytes=vmem_limit,
        ),
    )(x2, w1t, b1r, pool)

    # Slice off row/lane padding (padded rows contain gelu(b1)*pool garbage by
    # construction — they must be dropped here) and restore the input dtype.
    return out[:M, :out_features].astype(x.dtype).reshape(B, N, out_features)


# ------------------------- reference (plain JAX, f32) -------------------------

def mlp_reference(x, w1, b1, out_features):
    h = jnp.einsum("bni,hi->bnh", x, w1) + b1
    h = 0.5 * h * (1.0 + jax.lax.erf(h * _INV_SQRT2))
    hidden = h.shape[-1]
    pool = jnp.asarray(adaptive_avg_pool1d_matrix(hidden, out_features, out_features))
    return h @ pool


# ------------------------- main -------------------------

if __name__ == "__main__":
    # Module config: in_features=32, hidden_features=64, out_features defaults to in_features.
    in_features = 32
    hidden_features = 64
    out_features = in_features
    B, N = 2, 8

    key = jax.random.PRNGKey(0)
    kx, kw, kb = jax.random.split(key, 3)

    x = jax.random.normal(kx, (B, N, in_features), dtype=jnp.float32)
    # Deterministic synthetic params (shapes match nn.Linear(in, hidden)).
    bound = 1.0 / np.sqrt(in_features)
    w1 = jax.random.uniform(kw, (hidden_features, in_features),
                            minval=-bound, maxval=bound, dtype=jnp.float32)
    b1 = jax.random.uniform(kb, (hidden_features,),
                            minval=-bound, maxval=bound, dtype=jnp.float32)

    y = mlp_forward(x, w1, b1, out_features=out_features)
    y = jax.block_until_ready(y)

    y_ref = mlp_reference(x, w1, b1, out_features)
    # bf16 MXU inputs + bf16 writeback (f32 accumulation / f32 pooling) -> loosened tolerance.
    np.testing.assert_allclose(np.asarray(y), np.asarray(y_ref), rtol=2e-2, atol=2e-2)

    print("KERNEL_OK")
</pallas_src>

<mosaic_0001>
module attributes {stable_mosaic.version = 11 : i64} {
  func.func @mlp_kernel(%arg0: i32, %arg1: memref<16x32xf32, #tpu.memory_space<vmem>>, %arg2: memref<32x64xbf16, #tpu.memory_space<vmem>>, %arg3: memref<1x64xf32, #tpu.memory_space<vmem>>, %arg4: memref<64x128xf32, #tpu.memory_space<vmem>>, %arg5: memref<16x128xbf16, #tpu.memory_space<vmem>>) attributes {dimension_semantics = [#tpu.dimension_semantics<parallel>], iteration_bounds = array<i64: 1>, scalar_prefetch = 0 : i64, scratch_operands = 0 : i64, tpu.core_type = #tpu.core_type<tc>, window_params = [{transform_indices = @transform_0, window_bounds = array<i64: 16, 32>}, {pipeline_mode = #tpu.pipeline_mode<synchronous>, transform_indices = @transform_1, window_bounds = array<i64: 32, 64>}, {pipeline_mode = #tpu.pipeline_mode<synchronous>, transform_indices = @transform_2, window_bounds = array<i64: 1, 64>}, {pipeline_mode = #tpu.pipeline_mode<synchronous>, transform_indices = @transform_3, window_bounds = array<i64: 64, 128>}, {transform_indices = @transform_4, window_bounds = array<i64: 16, 128>}]} {
    %c0 = arith.constant 0 : index
    %c0_0 = arith.constant 0 : index
    %0 = vector.load %arg1[%c0, %c0_0] : memref<16x32xf32, #tpu.memory_space<vmem>>, vector<16x32xf32>
    %1 = arith.truncf %0 : vector<16x32xf32> to vector<16x32xbf16>
    %c0_1 = arith.constant 0 : index
    %c0_2 = arith.constant 0 : index
    %2 = vector.load %arg2[%c0_1, %c0_2] : memref<32x64xbf16, #tpu.memory_space<vmem>>, vector<32x64xbf16>
    %cst = arith.constant dense<0.000000e+00> : vector<16x64xf32>
    %3 = tpu.matmul %1, %2, %cst {dimension_numbers = #tpu.dot_dimension_numbers<[1], [0], [0], [1], [0, 0, 1, 1], [], []>} : vector<16x32xbf16>, vector<32x64xbf16>, vector<16x64xf32> -> vector<16x64xf32>
    %c0_3 = arith.constant 0 : index
    %c0_4 = arith.constant 0 : index
    %4 = vector.load %arg3[%c0_3, %c0_4] : memref<1x64xf32, #tpu.memory_space<vmem>>, vector<1x64xf32>
    %5 = vector.broadcast %4 : vector<1x64xf32> to vector<16x64xf32>
    %6 = arith.addf %3, %5 : vector<16x64xf32>
    %cst_5 = arith.constant 5.000000e-01 : f32
    %7 = vector.broadcast %cst_5 : f32 to vector<16x64xf32>
    %8 = arith.mulf %7, %6 : vector<16x64xf32>
    %cst_6 = arith.constant 0.707106769 : f32
    %9 = vector.broadcast %cst_6 : f32 to vector<16x64xf32>
    %10 = arith.mulf %6, %9 : vector<16x64xf32>
    %11 = math.erf %10 : vector<16x64xf32>
    %cst_7 = arith.constant 1.000000e+00 : f32
    %12 = vector.broadcast %cst_7 : f32 to vector<16x64xf32>
    %13 = arith.addf %12, %11 : vector<16x64xf32>
    %14 = arith.mulf %8, %13 : vector<16x64xf32>
    %c0_8 = arith.constant 0 : index
    %c0_9 = arith.constant 0 : index
    %15 = vector.load %arg4[%c0_8, %c0_9] : memref<64x128xf32, #tpu.memory_space<vmem>>, vector<64x128xf32>
    %cst_10 = arith.constant dense<0.000000e+00> : vector<16x128xf32>
    %16 = tpu.matmul %14, %15, %cst_10 {dimension_numbers = #tpu.dot_dimension_numbers<[1], [0], [0], [1], [0, 0, 1, 1], [], []>} : vector<16x64xf32>, vector<64x128xf32>, vector<16x128xf32> -> vector<16x128xf32>
    %17 = arith.truncf %16 : vector<16x128xf32> to vector<16x128xbf16>
    %c0_11 = arith.constant 0 : index
    %c0_12 = arith.constant 0 : index
    %18 = vector.load %arg5[%c0_11, %c0_12] : memref<16x128xbf16, #tpu.memory_space<vmem>>, vector<16x128xbf16>
    tpu.vector_store %arg5[%c0_11, %c0_12], %17 {strides = array<i32>} : memref<16x128xbf16, #tpu.memory_space<vmem>>, vector<16x128xbf16>,
    return
  }
  func.func @transform_0(%arg0: i32) -> (i32, i32) {
    %c0_i32 = arith.constant 0 : i32
    %c0_i32_0 = arith.constant 0 : i32
    return %arg0, %c0_i32 : i32, i32
  }
  func.func @transform_1(%arg0: i32) -> (i32, i32) {
    %c0_i32 = arith.constant 0 : i32
    %c0_i32_0 = arith.constant 0 : i32
    %c0_i32_1 = arith.constant 0 : i32
    return %c0_i32, %c0_i32_0 : i32, i32
  }
  func.func @transform_2(%arg0: i32) -> (i32, i32) {
    %c0_i32 = arith.constant 0 : i32
    %c0_i32_0 = arith.constant 0 : i32
    %c0_i32_1 = arith.constant 0 : i32
    return %c0_i32, %c0_i32_0 : i32, i32
  }
  func.func @transform_3(%arg0: i32) -> (i32, i32) {
    %c0_i32 = arith.constant 0 : i32
    %c0_i32_0 = arith.constant 0 : i32
    %c0_i32_1 = arith.constant 0 : i32
    return %c0_i32, %c0_i32_0 : i32, i32
  }
  func.func @transform_4(%arg0: i32) -> (i32, i32) {
    %c0_i32 = arith.constant 0 : i32
    %c0_i32_0 = arith.constant 0 : i32
    return %arg0, %c0_i32 : i32, i32
  }
}

</mosaic_0001>

<llo_original>
// kernel: mlp_forward.1
$region0: #{mlp_forward.1}
  #allocation0 [shape = 'u32[]', space=smem, size = 0x4, offset = 0x4, fixed_abs, tag = 'smem constant byte address 0x4 - core index']
  #allocation1 [shape = 'u32[144,128]{1,0:T(1,128)}', space=vmem, size = 0x12000, scoped, tag = 'internal scratch']
  %s0 = inlined_call_operand.hbm [shape: f32[16,32], index: 0, kind: input, shape index: {}]
  %s1 = inlined_call_operand.vmem [shape: bf16[32,64], index: 1, kind: input, shape index: {}]
  %s2 = inlined_call_operand.vmem [shape: f32[1,64], index: 2, kind: input, shape index: {}]
  %s3 = inlined_call_operand.vmem [shape: f32[64,128], index: 3, kind: input, shape index: {}]
  %s4 = inlined_call_operand.vmem [shape: bf16[16,128], index: 4, kind: output, shape index: {}]
  %s5 = sld [smem:[#allocation0]]
  $region30: #{mlp_forward.1} parent=0
    _
  %s7 = ssub.s32 1, %s5
  %s8 = scalar_select 0, %s7, %s5
  $region1: #{mlp_forward.1} parent=0
    #allocation2 [shape = 'u8[8192]{0}', space=vmem, size = 0x2000, scoped, tag = 'input window, operand 0, single buffered']
    #allocation3 [shape = 's32[1]{0}', space=sflag, size = 0x4, scoped, tag = 'scoped memory for mlp_forward.1']
    %9 = vsyncpa [#allocation3], 0
    // Predicated region
    $region2: #{mlp_forward.1} parent=1 // pred_check
      _
    $region3: #{mlp_forward.1} parent=1 // pred_check_branch
      %11 = sbr.rel (0) target = $region5
    $region4: #{mlp_forward.1} parent=1 // pred_region
      %s13 = ssub.s32 256, 256
      %14 = vsyncadd [#allocation3], %s13
      %s15 = sshll.u32 [#allocation2], 4
      %s16 = int_to_ptr.vmem [resolvable:$true] %s15
      %21 = dma.hbm_to_vmem [thread:$0]  %s0, 256, %s16, [#allocation3], 128, 128, 8
    $region5: #{mlp_forward.1} parent=1 // pred_fallthru
      _
    // Predicated region
    $region6: #{mlp_forward.1} parent=1 // pred_check
      _
    $region7: #{mlp_forward.1} parent=1 // pred_check_branch
      %23 = sbr.rel (0) target = $region9
    $region8: #{mlp_forward.1} parent=1 // pred_region
      _
    $region9: #{mlp_forward.1} parent=1 // pred_fallthru
      _
    // Predicated region
    $region10: #{mlp_forward.1} parent=1 // pred_check
      _
    $region11: #{mlp_forward.1} parent=1 // pred_check_branch
      %25 = sbr.rel (0) target = $region13
    $region12: #{mlp_forward.1} parent=1 // pred_region
      _
    $region13: #{mlp_forward.1} parent=1 // pred_fallthru
      _
    // Predicated region
    $region14: #{mlp_forward.1} parent=1 // pred_check
      _
    $region15: #{mlp_forward.1} parent=1 // pred_check_branch
      %27 = sbr.rel (0) target = $region17
    $region16: #{mlp_forward.1} parent=1 // pred_region
      _
    $region17: #{mlp_forward.1} parent=1 // pred_fallthru
      _
    // Predicated region
    $region18: #{mlp_forward.1} parent=1 // pred_check
      _
    $region19: #{mlp_forward.1} parent=1 // pred_check_branch
      %29 = sbr.rel (0) target = $region21
    $region20: #{mlp_forward.1} parent=1 // pred_region
      %30 = dma.done [#allocation3], 256
    $region21: #{mlp_forward.1} parent=1 // pred_fallthru
      _
    %v32 = vld [vmem:[#allocation2] sm:$0xff]
    %v33 = vld [vmem:[#allocation2 + $0x8] sm:$0xff]
    %v34 = vpack.c.bf16 %v33, %v32
    %v35 = vld [vmem:[%s1] sm:$0xf]
    %v36 = vld [vmem:[%s1 + $0x4] sm:$0xf]
    %v37 = vld [vmem:[%s1 + $0x8] sm:$0xf]
    %v38 = vld [vmem:[%s1 + $0xc] sm:$0xf]
    %v39 = vld [vmem:[%s2] sm:$0x1]
    %v41 = vlaneseq
    %v42 = vshrl.u32 %v41, 7
    %v43 = vsub.s32 0, %v42
    %v44 = vrot.slane %v39, %v43
    %v50 = vunpack.c.l.b16 %v35
    %v51 = vunpack.c.l.b16 %v36
    %v52 = vunpack.c.l.b16 %v37
    %v53 = vunpack.c.l.b16 %v38
    %v54 = vpack.c.b16 %v51, %v50
    %v55 = vpack.c.b16 %v53, %v52
    %vm58 = vcmask 261120
    %v60 = vsel %vm58, %v34, 0
    %62 = vmatprep.subr.bf16.mxu0 0
    %63 = vmatpush1.bf16.msra.mxu0 %v54
    %64 = vmatprep.subr.bf16.mxu0 0
    %65 = vmatpush1.bf16.msra.mxu0 %v55
    %66 = vmatprep.subr.bf16.mxu0 0
    %67 = vmatpush1.bf16.msra.mxu0 0
    %68 = vmatprep.subr.bf16.mxu0 0
    %69 = vmatpush1.bf16.msra.mxu0 0
    %70 = vmatprep.subr.bf16.mxu0 0
    %71 = vmatpush1.bf16.msra.mxu0 0
    %72 = vmatprep.subr.bf16.mxu0 0
    %73 = vmatpush1.bf16.msra.mxu0 0
    %74 = vmatprep.subr.bf16.mxu0 0
    %75 = vmatpush1.bf16.msra.mxu0 0
    %76 = vmatprep.subr.bf16.mxu0 0
    %77 = vmatpush1.bf16.msra.mxu0 0
    %78 = vmatprep.subr.bf16.mxu0 0
    %79 = vmatpush1.bf16.msra.mxu0 0
    %80 = vmatprep.subr.bf16.mxu0 0
    %81 = vmatpush1.bf16.msra.mxu0 0
    %82 = vmatprep.subr.bf16.mxu0 0
    %83 = vmatpush1.bf16.msra.mxu0 0
    %84 = vmatprep.subr.bf16.mxu0 0
    %85 = vmatpush1.bf16.msra.mxu0 0
    %86 = vmatprep.subr.bf16.mxu0 0
    %87 = vmatpush1.bf16.msra.mxu0 0
    %88 = vmatprep.subr.bf16.mxu0 0
    %89 = vmatpush1.bf16.msra.mxu0 0
    %90 = vmatprep.subr.bf16.mxu0 0
    %91 = vmatpush1.bf16.msra.mxu0 0
    %92 = vmatprep.subr.bf16.mxu0 0
    %93 = vmatpush1.bf16.msra.mxu0 0
    %94 = vmatprep.mubr.bf16.mxu0 0
    %95 = vmatmul.mubr.bf16.gmra.mrb[0].mxu0 %v60
    %v96 = vpop.f32.mrb[0].mxu0
    %v97 = vadd.f32 %v44, %v96
    %v98 = vpop.f32.mrb[0].mxu0
    %v99 = vpop.f32.mrb[0].mxu0
    %v100 = vadd.f32 %v44, %v99
    %v101 = vpop.f32.mrb[0].mxu0
    %102 = vdwg.mxu0
    %v103 = vmul.f32 %v97, 0.5
    %v104 = vmul.f32 %v100, 0.5
    %v105 = vmul.f32 %v97, 0.70710677
    %v106 = vmul.f32 %v100, 0.70710677
    %v107 = verf.f32.pop %v105
    %v108 = verf.f32.pop %v106
    %v109 = vadd.f32 %v107, 1.0
    %v110 = vadd.f32 %v108, 1.0
    %v111 = vmul.f32 %v103, %v109
    %v112 = vmul.f32 %v104, %v110
    %v113 = vld [vmem:[%s3] sm:$0xff]
    %v114 = vld [vmem:[%s3 + $0x8] sm:$0xff]
    %v115 = vld [vmem:[%s3 + $0x10] sm:$0xff]
    %v116 = vld [vmem:[%s3 + $0x18] sm:$0xff]
    %v117 = vld [vmem:[%s3 + $0x20] sm:$0xff]
    %v118 = vld [vmem:[%s3 + $0x28] sm:$0xff]
    %v119 = vld [vmem:[%s3 + $0x30] sm:$0xff]
    %v120 = vld [vmem:[%s3 + $0x38] sm:$0xff]
    %vm121 = vcmask 523264
    %v123 = vsel %vm121, %v111, 0
    %v126 = vsel %vm121, %v112, 0
    %128 = vmatprep.subr.mxu0 0.0
    %129 = vmatpush1.msra.mxu0 %v113
    %130 = vmatprep.subr.mxu0 0.0
    %131 = vmatpush1.msra.mxu0 %v114
    %132 = vmatprep.subr.mxu0 0.0
    %133 = vmatpush1.msra.mxu0 %v115
    %134 = vmatprep.subr.mxu0 0.0
    %135 = vmatpush1.msra.mxu0 %v116
    %136 = vmatprep.subr.mxu0 0.0
    %137 = vmatpush1.msra.mxu0 %v117
    %138 = vmatprep.subr.mxu0 0.0
    %139 = vmatpush1.msra.mxu0 %v118
    %140 = vmatprep.subr.mxu0 0.0
    %141 = vmatpush1.msra.mxu0 %v119
    %142 = vmatprep.subr.mxu0 0.0
    %143 = vmatpush1.msra.mxu0 %v120
    %144 = vmatprep.subr.mxu0 0.0
    %145 = vmatpush1.msra.mxu0 0.0
    %146 = vmatprep.subr.mxu0 0.0
    %147 = vmatpush1.msra.mxu0 0.0
    %148 = vmatprep.subr.mxu0 0.0
    %149 = vmatpush1.msra.mxu0 0.0
    %150 = vmatprep.subr.mxu0 0.0
    %151 = vmatpush1.msra.mxu0 0.0
    %152 = vmatprep.subr.mxu0 0.0
    %153 = vmatpush1.msra.mxu0 0.0
    %154 = vmatprep.subr.mxu0 0.0
    %155 = vmatpush1.msra.mxu0 0.0
    %156 = vmatprep.subr.mxu0 0.0
    %157 = vmatpush1.msra.mxu0 0.0
    %158 = vmatprep.subr.mxu0 0.0
    %159 = vmatpush1.msra.mxu0 0.0
    %160 = vmatprep.subr.mxu0 0.0
    %161 = vmatpush1.msra.mxu0 0.0
    %162 = vmatprep.subr.mxu0 0.0
    %163 = vmatpush1.msra.mxu0 0.0
    %164 = vmatprep.subr.mxu0 0.0
    %165 = vmatpush1.msra.mxu0 0.0
    %166 = vmatprep.subr.mxu0 0.0
    %167 = vmatpush1.msra.mxu0 0.0
    %168 = vmatprep.subr.mxu0 0.0
    %169 = vmatpush1.msra.mxu0 0.0
    %170 = vmatprep.subr.mxu0 0.0
    %171 = vmatpush1.msra.mxu0 0.0
    %172 = vmatprep.subr.mxu0 0.0
    %173 = vmatpush1.msra.mxu0 0.0
    %174 = vmatprep.subr.mxu0 0.0
    %175 = vmatpush1.msra.mxu0 0.0
    %176 = vmatprep.subr.mxu0 0.0
    %177 = vmatpush1.msra.mxu0 0.0
    %178 = vmatprep.subr.mxu0 0.0
    %179 = vmatpush1.msra.mxu0 0.0
    %180 = vmatprep.subr.mxu0 0.0
    %181 = vmatpush1.msra.mxu0 0.0
    %182 = vmatprep.subr.mxu0 0.0
    %183 = vmatpush1.msra.mxu0 0.0
    %184 = vmatprep.subr.mxu0 0.0
    %185 = vmatpush1.msra.mxu0 0.0
    %186 = vmatprep.subr.mxu0 0.0
    %187 = vmatpush1.msra.mxu0 0.0
    %188 = vmatprep.subr.mxu0 0.0
    %189 = vmatpush1.msra.mxu0 0.0
    %190 = vmatprep.subr.mxu0 0.0
    %191 = vmatpush1.msra.mxu0 0.0
    %192 = vmatprep.mubr.f32.mxu0 0.0
    %193 = vmatmul.mubr.f32.gmra.mrb[0].mxu0 %v123
    %v194 = vpop.f32.mrb[0].mxu0
    %v195 = vadd.f32 0.0, %v194
    %v196 = vpop.f32.mrb[0].mxu0
    %197 = vmatprep.mubr.f32.mxu0 0.0
    %198 = vmatmul.mubr.f32.gmra.mrb[0].mxu0 %v126
    %v199 = vpop.f32.mrb[0].mxu0
    %v200 = vadd.f32 0.0, %v199
    %v201 = vpop.f32.mrb[0].mxu0
    %202 = vdwg.mxu0
    %v203 = vpack.c.bf16 %v200, %v195
    %v205 = vunpack.c.l.b16 %v203
    %v206 = vunpack.c.h.b16 %v203
    %v207 = vpack.c.b16 %v205, %v205
    %v208 = vpack.c.b16 %v206, %v206
    %211 = vst [vmem:[%s4] sm:$0xf] %v207
    %212 = vst [vmem:[%s4 + $0x4] sm:$0xf] %v208
    // Predicated region
    $region22: #{mlp_forward.1} parent=1 // pred_check
      _
    $region23: #{mlp_forward.1} parent=1 // pred_check_branch
      %214 = sbr.rel (0) target = $region25
    $region24: #{mlp_forward.1} parent=1 // pred_region
      _
    $region25: #{mlp_forward.1} parent=1 // pred_fallthru
      _
    // Predicated region
    $region26: #{mlp_forward.1} parent=1 // pred_check
      _
    $region27: #{mlp_forward.1} parent=1 // pred_check_branch
      %216 = sbr.rel (0) target = $region29
    $region28: #{mlp_forward.1} parent=1 // pred_region
      _
    $region29: #{mlp_forward.1} parent=1 // pred_fallthru
      _
    %217 = vsyncpa [#allocation3], 1

</llo_original>
